<compile_context>
chip_gen: v5e
topology: v5e:2x2
jax: 0.10.0
libtpu: 0.0.40
codegen_flags: <defaults>
</compile_context>

<pallas_src>
import math

import jax
import jax.numpy as jnp
import numpy as np
from jax.experimental import pallas as pl
from jax.experimental.pallas import tpu as pltpu


def round_up(x: int, m: int) -> int:
    return (x + m - 1) // m * m


# ---------------------------------------------------------------------------
# Pallas kernel: one batch tile of  y = x @ W^T + b
#   x_ref : (b_tile, K_pad)   VMEM   (compute dtype: f32 or bf16)
#   wt_ref: (K_pad,  N_pad)   VMEM   (W^T, resident across grid steps)
#   b_ref : (1,      N_pad)   VMEM   (f32 bias, zero-padded)
#   o_ref : (b_tile, N_pad)   VMEM   (f32 output)
# ---------------------------------------------------------------------------
def symlinear_kernel(x_ref, wt_ref, b_ref, o_ref):
    acc = jnp.dot(x_ref[...], wt_ref[...], preferred_element_type=jnp.float32)
    o_ref[...] = (acc + b_ref[...]).astype(o_ref.dtype)


def symlinear_pallas(x, wt_padded, bias_padded, out_size,
                     *, block_b=256, compute_dtype=None):
    """Forward pass.

    x           : (B, in_size) activations (f32).
    wt_padded   : (K_pad, N_pad) pre-expanded, pre-transposed, zero-padded W^T
                  (built once per parameter update, NOT per call).
    bias_padded : (1, N_pad) zero-padded bias (f32).
    out_size    : true (unpadded) output width; result is sliced back to it.
    compute_dtype: optional (e.g. jnp.bfloat16) for the MXU input path on
                  v6e/v7x; accumulation stays f32.
    """
    B, in_size = x.shape
    in_pad, out_pad = wt_padded.shape
    out_dtype = x.dtype

    # Batch tile: multiple of 8 sublanes (16 for bf16 inputs), capped at block_b.
    sub = 16 if compute_dtype == jnp.bfloat16 else 8
    b_tile = min(round_up(block_b, sub), round_up(max(B, sub), sub))
    B_pad = round_up(B, b_tile)

    # Zero-pad activations: K -> K_pad (zero cols contribute nothing),
    # batch -> B_pad (extra rows sliced off below).
    x_p = jnp.pad(x, ((0, B_pad - B), (0, in_pad - in_size)))
    if compute_dtype is not None:
        x_p = x_p.astype(compute_dtype)
        wt_padded = wt_padded.astype(compute_dtype)

    grid = (B_pad // b_tile,)
    y_pad = pl.pallas_call(
        symlinear_kernel,
        out_shape=jax.ShapeDtypeStruct((B_pad, out_pad), out_dtype),
        grid=grid,
        in_specs=[
            pl.BlockSpec((b_tile, in_pad), lambda i: (i, 0)),
            pl.BlockSpec((in_pad, out_pad), lambda i: (0, 0)),   # resident weight
            pl.BlockSpec((1, out_pad), lambda i: (0, 0)),        # resident bias
        ],
        out_specs=pl.BlockSpec((b_tile, out_pad), lambda i: (i, 0)),
        compiler_params=pltpu.CompilerParams(
            dimension_semantics=("parallel",),
        ),
    )(x_p, wt_padded, bias_padded)

    return y_pad[:B, :out_size]


# ---------------------------------------------------------------------------
# Parameter construction (sym_utils.build_weight / sizes_to_size equivalents)
# ---------------------------------------------------------------------------
def sizes_to_size(n, sizes):
    sym, non = sizes
    return n * sym + non


def init_symlinear_params(key, n, in_sizes, out_sizes, dtype=jnp.float32):
    in_sym, in_non = in_sizes
    out_sym, out_non = out_sizes
    out_size = sizes_to_size(n, out_sizes)
    stdv = 1.0 / math.sqrt(out_size)

    keys = jax.random.split(key, 6)
    u = lambda k, shape: jax.random.uniform(
        k, shape, dtype=dtype, minval=-stdv, maxval=stdv
    )
    return {
        "w_sym_diag":     u(keys[0], (out_sym, in_sym)),   # sym_i -> sym_i
        "w_sym_off":      u(keys[1], (out_sym, in_sym)),   # sym_j -> sym_i, j != i
        "w_sym_from_non": u(keys[2], (out_sym, in_non)),   # non   -> sym_i (shared)
        "w_non_from_sym": u(keys[3], (out_non, in_sym)),   # sym_j -> non   (shared)
        "w_non_non":      u(keys[4], (out_non, in_non)),   # non   -> non
        "bias":           u(keys[5], (out_size,)),
    }


def expand_full_weight(n, params):
    """Dense (out_size, in_size) W — used only for the pure-JAX reference."""
    w_dd = params["w_sym_diag"]
    w_do = params["w_sym_off"]
    w_dn = params["w_sym_from_non"]
    w_nd = params["w_non_from_sym"]
    w_nn = params["w_non_non"]

    eye = jnp.eye(n, dtype=w_dd.dtype)
    ones = jnp.ones((n, n), dtype=w_dd.dtype)
    ss = jnp.kron(eye, w_dd) + jnp.kron(ones - eye, w_do)   # (n*out_sym, n*in_sym)
    sn = jnp.tile(w_dn, (n, 1))                              # (n*out_sym, in_non)
    ns = jnp.tile(w_nd, (1, n))                              # (out_non,  n*in_sym)
    nn = w_nn                                                # (out_non,  in_non)

    top = jnp.concatenate([ss, sn], axis=1)
    bot = jnp.concatenate([ns, nn], axis=1)
    return jnp.concatenate([top, bot], axis=0)               # (out_size, in_size)


def expand_weight_t_padded(n, params, in_pad, out_pad):
    """Build W^T directly in (in_size, out_size) orientation, zero-padded to
    (in_pad, out_pad). Done ONCE per parameter update — no per-call transpose."""
    w_dd = params["w_sym_diag"]
    w_do = params["w_sym_off"]
    w_dn = params["w_sym_from_non"]
    w_nd = params["w_non_from_sym"]
    w_nn = params["w_non_non"]

    eye = jnp.eye(n, dtype=w_dd.dtype)
    ones = jnp.ones((n, n), dtype=w_dd.dtype)
    ss_t = jnp.kron(eye, w_dd.T) + jnp.kron(ones - eye, w_do.T)  # (n*in_sym, n*out_sym)
    ns_t = jnp.tile(w_nd.T, (n, 1))                               # (n*in_sym, out_non)
    sn_t = jnp.tile(w_dn.T, (1, n))                               # (in_non,  n*out_sym)
    nn_t = w_nn.T                                                 # (in_non,  out_non)

    top = jnp.concatenate([ss_t, ns_t], axis=1)
    bot = jnp.concatenate([sn_t, nn_t], axis=1)
    wt = jnp.concatenate([top, bot], axis=0)                      # (in_size, out_size)

    in_size, out_size = wt.shape
    return jnp.pad(wt, ((0, in_pad - in_size), (0, out_pad - out_size)))


# ---------------------------------------------------------------------------
if __name__ == "__main__":
    # Small shapes consistent with the module.
    n = 4
    in_sizes = (8, 16)    # in_size  = 4*8 + 16 = 48
    out_sizes = (8, 32)   # out_size = 4*8 + 32 = 64
    batch = 8

    in_size = sizes_to_size(n, in_sizes)
    out_size = sizes_to_size(n, out_sizes)
    in_pad = round_up(in_size, 128)    # 128 (lane-dense K)
    out_pad = round_up(out_size, 128)  # 128 (lane-dense N)

    key = jax.random.PRNGKey(0)
    k_param, k_x = jax.random.split(key)
    params = init_symlinear_params(k_param, n, in_sizes, out_sizes)
    x = jax.random.normal(k_x, (batch, in_size), dtype=jnp.float32)

    # Parameter expansion: once per parameter update, not per forward call.
    wt_padded = jax.block_until_ready(expand_weight_t_padded(n, params, in_pad, out_pad))
    bias_padded = jnp.pad(params["bias"], (0, out_pad - out_size)).reshape(1, out_pad)

    # Pure-JAX reference (same semantics as sym_utils.linear: x @ W.T + b).
    w_full = expand_full_weight(n, params)
    y_ref = x @ w_full.T + params["bias"][None, :]

    # Sanity: transposed expansion matches the canonical dense weight.
    np.testing.assert_allclose(
        np.asarray(wt_padded[:in_size, :out_size]), np.asarray(w_full.T),
        rtol=1e-6, atol=1e-6)

    # f32 path (tight tolerance).
    y = symlinear_pallas(x, wt_padded, bias_padded, out_size)
    y = jax.block_until_ready(y)
    np.testing.assert_allclose(np.asarray(y), np.asarray(y_ref),
                               rtol=1e-5, atol=1e-5)
    assert y.shape == (batch, out_size)

    # bf16-input MXU path (v6e/v7x fast path; f32 accumulation), loose tolerance.
    y_bf16 = symlinear_pallas(x, wt_padded, bias_padded, out_size,
                              compute_dtype=jnp.bfloat16)
    y_bf16 = jax.block_until_ready(y_bf16)
    np.testing.assert_allclose(np.asarray(y_bf16), np.asarray(y_ref),
                               rtol=5e-2, atol=5e-2)

    print("KERNEL_OK")
</pallas_src>

<mosaic_0001>
module attributes {stable_mosaic.version = 11 : i64} {
  func.func @symlinear_kernel(%arg0: i32, %arg1: memref<8x128xf32, #tpu.memory_space<vmem>>, %arg2: memref<128x128xf32, #tpu.memory_space<vmem>>, %arg3: memref<1x128xf32, #tpu.memory_space<vmem>>, %arg4: memref<8x128xf32, #tpu.memory_space<vmem>>) attributes {dimension_semantics = [#tpu.dimension_semantics<parallel>], iteration_bounds = array<i64: 1>, scalar_prefetch = 0 : i64, scratch_operands = 0 : i64, tpu.core_type = #tpu.core_type<tc>, window_params = [{transform_indices = @transform_0, window_bounds = array<i64: 8, 128>}, {pipeline_mode = #tpu.pipeline_mode<synchronous>, transform_indices = @transform_1, window_bounds = array<i64: 128, 128>}, {pipeline_mode = #tpu.pipeline_mode<synchronous>, transform_indices = @transform_2, window_bounds = array<i64: 1, 128>}, {transform_indices = @transform_3, window_bounds = array<i64: 8, 128>}]} {
    %c0 = arith.constant 0 : index
    %c0_0 = arith.constant 0 : index
    %0 = vector.load %arg1[%c0, %c0_0] : memref<8x128xf32, #tpu.memory_space<vmem>>, vector<8x128xf32>
    %c0_1 = arith.constant 0 : index
    %c0_2 = arith.constant 0 : index
    %1 = vector.load %arg2[%c0_1, %c0_2] : memref<128x128xf32, #tpu.memory_space<vmem>>, vector<128x128xf32>
    %cst = arith.constant dense<0.000000e+00> : vector<8x128xf32>
    %2 = tpu.matmul %0, %1, %cst {dimension_numbers = #tpu.dot_dimension_numbers<[1], [0], [0], [1], [0, 0, 1, 1], [], []>} : vector<8x128xf32>, vector<128x128xf32>, vector<8x128xf32> -> vector<8x128xf32>
    %c0_3 = arith.constant 0 : index
    %c0_4 = arith.constant 0 : index
    %3 = vector.load %arg3[%c0_3, %c0_4] : memref<1x128xf32, #tpu.memory_space<vmem>>, vector<1x128xf32>
    %4 = vector.broadcast %3 : vector<1x128xf32> to vector<8x128xf32>
    %5 = arith.addf %2, %4 : vector<8x128xf32>
    %c0_5 = arith.constant 0 : index
    %c0_6 = arith.constant 0 : index
    %6 = vector.load %arg4[%c0_5, %c0_6] : memref<8x128xf32, #tpu.memory_space<vmem>>, vector<8x128xf32>
    tpu.vector_store %arg4[%c0_5, %c0_6], %5 {strides = array<i32>} : memref<8x128xf32, #tpu.memory_space<vmem>>, vector<8x128xf32>,
    return
  }
  func.func @transform_0(%arg0: i32) -> (i32, i32) {
    %c0_i32 = arith.constant 0 : i32
    %c0_i32_0 = arith.constant 0 : i32
    return %arg0, %c0_i32 : i32, i32
  }
  func.func @transform_1(%arg0: i32) -> (i32, i32) {
    %c0_i32 = arith.constant 0 : i32
    %c0_i32_0 = arith.constant 0 : i32
    %c0_i32_1 = arith.constant 0 : i32
    return %c0_i32, %c0_i32_0 : i32, i32
  }
  func.func @transform_2(%arg0: i32) -> (i32, i32) {
    %c0_i32 = arith.constant 0 : i32
    %c0_i32_0 = arith.constant 0 : i32
    %c0_i32_1 = arith.constant 0 : i32
    return %c0_i32, %c0_i32_0 : i32, i32
  }
  func.func @transform_3(%arg0: i32) -> (i32, i32) {
    %c0_i32 = arith.constant 0 : i32
    %c0_i32_0 = arith.constant 0 : i32
    return %arg0, %c0_i32 : i32, i32
  }
}

</mosaic_0001>

<llo_original>
// kernel: tpu_custom_call.1
$region0: #{tpu_custom_call.1}
  #allocation0 [shape = 'u32[]', space=smem, size = 0x4, offset = 0x4, fixed_abs, tag = 'smem constant byte address 0x4 - core index']
  #allocation1 [shape = 'u32[72,128]{1,0:T(1,128)}', space=vmem, size = 0x9000, scoped, tag = 'internal scratch']
  %s0 = inlined_call_operand.hbm [shape: f32[8,128], index: 0, kind: input, shape index: {}]
  %s1 = inlined_call_operand.hbm [shape: f32[128,128], index: 1, kind: input, shape index: {}]
  %s2 = inlined_call_operand.vmem [shape: f32[1,128], index: 2, kind: input, shape index: {}]
  %s3 = inlined_call_operand.hbm [shape: f32[8,128], index: 3, kind: output, shape index: {}]
  %s4 = sld [smem:[#allocation0]]
  $region30: #{tpu_custom_call.1} parent=0
    _
  %s6 = ssub.s32 1, %s4
  %s7 = scalar_select 0, %s6, %s4
  $region1: #{tpu_custom_call.1} parent=0
    #allocation2 [shape = 'u8[4096]{0}', space=vmem, size = 0x1000, scoped, tag = 'input window, operand 0, single buffered']
    #allocation3 [shape = 's32[1]{0}', space=sflag, size = 0x4, scoped, tag = 'scoped memory for tpu_custom_call.1']
    #allocation4 [shape = 's32[1]{0}', space=sflag, size = 0x4, scoped, tag = 'scoped memory for tpu_custom_call.1']
    #allocation5 [shape = 'u8[65536]{0}', space=vmem, size = 0x10000, scoped, tag = 'input window, operand 1, single buffered']
    #allocation6 [shape = 's32[1]{0}', space=sflag, size = 0x4, scoped, tag = 'scoped memory for tpu_custom_call.1']
    #allocation7 [shape = 'u8[4096]{0}', space=vmem, size = 0x1000, scoped, tag = 'output window, operand 0, single buffered']
    %8 = vsyncpa [#allocation3], 0
    %9 = vsyncpa [#allocation6], 0
    %10 = vsyncpa [#allocation4], 0
    // Predicated region
    $region2: #{tpu_custom_call.1} parent=1 // pred_check
      _
    $region3: #{tpu_custom_call.1} parent=1 // pred_check_branch
      %12 = sbr.rel (0) target = $region5
    $region4: #{tpu_custom_call.1} parent=1 // pred_region
      %14 = vsyncadd [#allocation3], 0
      %s16 = sshll.u32 %s0, 4
      %s17 = int_to_ptr.hbm [resolvable:$true] %s16
      %s18 = sshll.u32 [#allocation2], 4
      %s19 = int_to_ptr.vmem [resolvable:$true] %s18
      %21 = dma.hbm_to_vmem [thread:$0]  %s17, 128, %s19, [#allocation3]
    $region5: #{tpu_custom_call.1} parent=1 // pred_fallthru
      _
    // Predicated region
    $region6: #{tpu_custom_call.1} parent=1 // pred_check
      _
    $region7: #{tpu_custom_call.1} parent=1 // pred_check_branch
      %23 = sbr.rel (0) target = $region9
    $region8: #{tpu_custom_call.1} parent=1 // pred_region
      %25 = vsyncadd [#allocation6], 0
      %s26 = sshll.u32 %s1, 4
      %s27 = int_to_ptr.hbm [resolvable:$true] %s26
      %s28 = sshll.u32 [#allocation5], 4
      %s29 = int_to_ptr.vmem [resolvable:$true] %s28
      %34 = dma.hbm_to_vmem [thread:$0]  %s27, 2048, %s29, [#allocation6], 128, 128, 8
    $region9: #{tpu_custom_call.1} parent=1 // pred_fallthru
      _
    // Predicated region
    $region10: #{tpu_custom_call.1} parent=1 // pred_check
      _
    $region11: #{tpu_custom_call.1} parent=1 // pred_check_branch
      %36 = sbr.rel (0) target = $region13
    $region12: #{tpu_custom_call.1} parent=1 // pred_region
      _
    $region13: #{tpu_custom_call.1} parent=1 // pred_fallthru
      _
    // Predicated region
    $region14: #{tpu_custom_call.1} parent=1 // pred_check
      _
    $region15: #{tpu_custom_call.1} parent=1 // pred_check_branch
      %38 = sbr.rel (0) target = $region17
    $region16: #{tpu_custom_call.1} parent=1 // pred_region
      %40 = dma.done [#allocation3], 128
    $region17: #{tpu_custom_call.1} parent=1 // pred_fallthru
      _
    // Predicated region
    $region18: #{tpu_custom_call.1} parent=1 // pred_check
      _
    $region19: #{tpu_custom_call.1} parent=1 // pred_check_branch
      %42 = sbr.rel (0) target = $region21
    $region20: #{tpu_custom_call.1} parent=1 // pred_region
      %44 = dma.done [#allocation6], 2048
    $region21: #{tpu_custom_call.1} parent=1 // pred_fallthru
      _
    %v45 = vld [vmem:[#allocation2] sm:$0xff]
    %v46 = vld [vmem:[#allocation5] sm:$0xff]
    %v47 = vld [vmem:[#allocation5 + $0x8] sm:$0xff]
    %v48 = vld [vmem:[#allocation5 + $0x10] sm:$0xff]
    %v49 = vld [vmem:[#allocation5 + $0x18] sm:$0xff]
    %v50 = vld [vmem:[#allocation5 + $0x20] sm:$0xff]
    %v51 = vld [vmem:[#allocation5 + $0x28] sm:$0xff]
    %v52 = vld [vmem:[#allocation5 + $0x30] sm:$0xff]
    %v53 = vld [vmem:[#allocation5 + $0x38] sm:$0xff]
    %v54 = vld [vmem:[#allocation5 + $0x40] sm:$0xff]
    %v55 = vld [vmem:[#allocation5 + $0x48] sm:$0xff]
    %v56 = vld [vmem:[#allocation5 + $0x50] sm:$0xff]
    %v57 = vld [vmem:[#allocation5 + $0x58] sm:$0xff]
    %v58 = vld [vmem:[#allocation5 + $0x60] sm:$0xff]
    %v59 = vld [vmem:[#allocation5 + $0x68] sm:$0xff]
    %v60 = vld [vmem:[#allocation5 + $0x70] sm:$0xff]
    %v61 = vld [vmem:[#allocation5 + $0x78] sm:$0xff]
    %v62 = vld [vmem:[%s2] sm:$0x1]
    %v64 = vperm.slane %v62, 0
    %66 = vmatpush.msra.mxu0 %v61
    %67 = vmatpush.msra.mxu0 %v60
    %68 = vmatpush.msra.mxu0 %v59
    %69 = vmatpush.msra.mxu0 %v58
    %70 = vmatpush.msra.mxu0 %v57
    %71 = vmatpush.msra.mxu0 %v56
    %72 = vmatpush.msra.mxu0 %v55
    %73 = vmatpush.msra.mxu0 %v54
    %74 = vmatpush.msra.mxu0 %v53
    %75 = vmatpush.msra.mxu0 %v52
    %76 = vmatpush.msra.mxu0 %v51
    %77 = vmatpush.msra.mxu0 %v50
    %78 = vmatpush.msra.mxu0 %v49
    %79 = vmatpush.msra.mxu0 %v48
    %80 = vmatpush.msra.mxu0 %v47
    %81 = vmatpush.msra.mxu0 %v46
    %82 = vmatmul.f32.gmra.mxu0 %v45
    %v83 = vpop.f32.mrf.mxu0
    %v84 = vadd.f32 %v64, %v83
    %85 = vdwg.mxu0
    %86 = vst [vmem:[#allocation7] sm:$0xff] %v84
    // Predicated region
    $region22: #{tpu_custom_call.1} parent=1 // pred_check
      _
    $region23: #{tpu_custom_call.1} parent=1 // pred_check_branch
      %88 = sbr.rel (0) target = $region25
    $region24: #{tpu_custom_call.1} parent=1 // pred_region
      %90 = vsyncadd [#allocation4], 0
      %s92 = sshll.u32 [#allocation7], 4
      %s93 = int_to_ptr.vmem [resolvable:$true] %s92
      %s94 = sshll.u32 %s3, 4
      %s95 = int_to_ptr.hbm [resolvable:$true] %s94
      %97 = dma.vmem_to_hbm [thread:$0]  %s93, 128, %s95, [#allocation4]
    $region25: #{tpu_custom_call.1} parent=1 // pred_fallthru
      _
    // Predicated region
    $region26: #{tpu_custom_call.1} parent=1 // pred_check
      _
    $region27: #{tpu_custom_call.1} parent=1 // pred_check_branch
      %99 = sbr.rel (0) target = $region29
    $region28: #{tpu_custom_call.1} parent=1 // pred_region
      %101 = dma.done [#allocation4], 128
    $region29: #{tpu_custom_call.1} parent=1 // pred_fallthru
      _
    %102 = vsyncpa [#allocation3], 1
    %103 = vsyncpa [#allocation6], 1
    %104 = vsyncpa [#allocation4], 1

</llo_original>
